<compile_context>
chip_gen: v7x
topology: tpu7x:2x2x1
jax: 0.10.0
libtpu: 0.0.40
codegen_flags: <defaults>
</compile_context>

<pallas_src>
import functools
import math

import jax
import jax.numpy as jnp
from jax.experimental import pallas as pl
from jax.experimental.pallas import tpu as pltpu


def _round_up(a, b):
    return (a + b - 1) // b * b


def _leaky_relu(x, slope):
    return jnp.where(x >= 0, x, slope * x)


def _expr_decoder_kernel(*refs, negative_slope, num_heads, d_head):
    """Fused MLP decoder (all heads -> one lane-padded output tile).

    refs = (x_ref,
            [w1, b1, w2, b2] * num_heads,     # per-(packed-)head layer 1/2 params
            w3_stack, b3_merged,              # merged third layer
            out_ref)

    Per-grid-step shapes (D = d_head, H = num_heads):
      x_ref    : (TILE, D_IN)
      w1       : (D_IN, D)        b1 : (1, D)     (f32)
      w2       : (D, D)           b2 : (1, D)     (f32)
      w3_stack : (H*D, P_PAD)     b3 : (1, P_PAD) (f32)
      out_ref  : (TILE, P_PAD)    f32
    """
    x_ref = refs[0]
    head_refs = refs[1:1 + 4 * num_heads]
    w3_ref = refs[1 + 4 * num_heads]
    b3_ref = refs[2 + 4 * num_heads]
    out_ref = refs[3 + 4 * num_heads]

    x = x_ref[...]
    total = None
    for h in range(num_heads):
        w1, b1, w2, b2 = head_refs[4 * h:4 * h + 4]
        y = jnp.dot(x.astype(w1.dtype), w1[...],
                    preferred_element_type=jnp.float32)
        y = _leaky_relu(y + b1[...], negative_slope)
        y = jnp.dot(y.astype(w2.dtype), w2[...],
                    preferred_element_type=jnp.float32)
        y = _leaky_relu(y + b2[...], negative_slope)
        w3_h = w3_ref[pl.ds(h * d_head, d_head), :]
        contrib = jnp.dot(y.astype(w3_h.dtype), w3_h,
                          preferred_element_type=jnp.float32)
        total = contrib if total is None else total + contrib
    out_ref[...] = (total + b3_ref[...]).astype(out_ref.dtype)


def pack_expr_decoder_params(fc_params, zero_params=None, *,
                             use_bf16_matmul=False, merge_lane_budget=128):
    """Pack PyTorch-layout Linear params (w: (out,in), b: (out,)) once.

    Hoisted out of the hot path per perf feedback.  Returns a dict consumed by
    expr_decoder_apply().
    """
    heads = [fc_params] + ([zero_params] if zero_params is not None else [])
    num_heads = len(heads)
    d_model = int(fc_params[0].shape[0])
    d_in = int(fc_params[0].shape[1])
    peak_length = int(fc_params[4].shape[0])
    p_total = num_heads * peak_length
    p_pad = _round_up(max(p_total, 1), 128)

    wdt = jnp.bfloat16 if use_bf16_matmul else jnp.float32
    f32 = jnp.float32

    # Fully concatenate heads (3 matmuls total) when the joint width still fits
    # a single native MXU tile; otherwise keep layer-1/2 per head and only merge
    # the third layer / output.
    merge_heads = num_heads > 1 and num_heads * d_model <= merge_lane_budget

    def t(w):  # (out, in) -> (in, out), f32
        return jnp.asarray(w, f32).T

    # Merged third layer: rows [h*d : (h+1)*d], cols [h*P : (h+1)*P] hold W3_h^T.
    w3_stack = jnp.zeros((num_heads * d_model, p_pad), f32)
    b3_merged = jnp.zeros((1, p_pad), f32)
    for h, (_, _, _, _, w3, b3) in enumerate(heads):
        w3_stack = w3_stack.at[h * d_model:(h + 1) * d_model,
                               h * peak_length:(h + 1) * peak_length].set(t(w3))
        b3_merged = b3_merged.at[0, h * peak_length:(h + 1) * peak_length].set(
            jnp.asarray(b3, f32))

    flat_params = []
    if merge_heads:
        dh = num_heads * d_model
        w1c = jnp.concatenate([t(hd[0]) for hd in heads], axis=1)          # (d_in, H*d)
        b1c = jnp.concatenate([jnp.asarray(hd[1], f32) for hd in heads])[None, :]
        w2c = jnp.zeros((dh, dh), f32)                                     # block-diag
        for h, hd in enumerate(heads):
            w2c = w2c.at[h * d_model:(h + 1) * d_model,
                         h * d_model:(h + 1) * d_model].set(t(hd[2]))
        b2c = jnp.concatenate([jnp.asarray(hd[3], f32) for hd in heads])[None, :]
        flat_params += [w1c.astype(wdt), b1c, w2c.astype(wdt), b2c]
        kernel_num_heads, d_head = 1, dh
    else:
        for (w1, b1, w2, b2, _, _) in heads:
            flat_params += [t(w1).astype(wdt), jnp.asarray(b1, f32)[None, :],
                            t(w2).astype(wdt), jnp.asarray(b2, f32)[None, :]]
        kernel_num_heads, d_head = num_heads, d_model

    flat_params += [w3_stack.astype(wdt), b3_merged]

    return dict(flat_params=flat_params, kernel_num_heads=kernel_num_heads,
                d_head=d_head, num_heads=num_heads, peak_length=peak_length,
                p_pad=p_pad, d_in=d_in, compute_dtype=wdt)


def _pick_row_tile(n, row_tile):
    if n > row_tile:
        return row_tile
    # Small problems: single step is cheapest, but if there is enough work to
    # split, use >=2 steps so v7x's 2 TensorCores both get a share.
    if n >= 512:
        return _round_up(pl.cdiv(n, 2), 8)
    return _round_up(max(n, 8), 8)


def expr_decoder_apply(packed, x, *, negative_slope=0.01, row_tile=512):
    """Run the fused ExprDecoder forward.  Returns dict(pred=..[, zero_probs=..])."""
    *lead, d_in = x.shape
    assert d_in == packed["d_in"]
    n = 1
    for s in lead:
        n *= s

    flat_params = packed["flat_params"]
    p_pad = packed["p_pad"]
    peak_length = packed["peak_length"]
    num_heads = packed["num_heads"]
    cdt = packed["compute_dtype"]

    x2d = x.reshape(n, d_in).astype(cdt)
    tile = _pick_row_tile(n, row_tile)
    n_pad = _round_up(n, tile)
    if n_pad != n:
        x2d = jnp.pad(x2d, ((0, n_pad - n), (0, 0)))
    grid = (n_pad // tile,)

    x_spec = pl.BlockSpec((tile, d_in), lambda i: (i, 0))
    # Constant-index full-shape blocks: Pallas keeps them resident (no per-step DMA).
    param_specs = [pl.BlockSpec(p.shape, lambda i: (0, 0)) for p in flat_params]
    out_spec = pl.BlockSpec((tile, p_pad), lambda i: (i, 0))
    out_shape = jax.ShapeDtypeStruct((n_pad, p_pad), jnp.float32)

    # VMEM budget: resident params + double-buffered x/out blocks + headroom.
    # Cap well below v7x's 64 MiB/TC physical VMEM.
    param_bytes = sum(int(p.size) * p.dtype.itemsize for p in flat_params)
    io_bytes = (tile * d_in * jnp.dtype(cdt).itemsize) + (tile * p_pad * 4)
    hidden_bytes = 2 * tile * packed["kernel_num_heads"] * packed["d_head"] * 4
    vmem_bytes = param_bytes + 2 * io_bytes + hidden_bytes + (4 << 20)
    vmem_bytes = int(max(16 << 20, min(vmem_bytes, 48 << 20)))

    kernel = functools.partial(
        _expr_decoder_kernel,
        negative_slope=negative_slope,
        num_heads=packed["kernel_num_heads"],
        d_head=packed["d_head"],
    )

    out = pl.pallas_call(
        kernel,
        out_shape=out_shape,
        grid_spec=pl.GridSpec(
            grid=grid,
            in_specs=[x_spec] + param_specs,
            out_specs=out_spec,
        ),
        compiler_params=pltpu.CompilerParams(
            dimension_semantics=("parallel",),
            vmem_limit_bytes=vmem_bytes,
        ),
    )(x2d, *flat_params)

    pred = out[:n, 0:peak_length].reshape(*lead, peak_length)
    result = {"pred": pred}
    if num_heads > 1:
        zero_logits = out[:n, peak_length:2 * peak_length].reshape(*lead, peak_length)
        # sigmoid on the tiny real slice (not the padded 128-lane tile).
        result["zero_probs"] = jax.nn.sigmoid(zero_logits)
    return result


def expr_decoder_forward(x, fc_params, zero_params=None, *,
                         negative_slope=0.01, row_tile=512,
                         use_bf16_matmul=False):
    """Convenience wrapper: pack + apply in one call (matches ExprDecoder.forward)."""
    packed = pack_expr_decoder_params(fc_params, zero_params,
                                      use_bf16_matmul=use_bf16_matmul)
    return expr_decoder_apply(packed, x, negative_slope=negative_slope,
                              row_tile=row_tile)


if __name__ == "__main__":
    d_model = 32
    peak_length = 1
    explicit_zero_prob = True
    use_batch_labels = False
    batch, seq = 2, 8
    d_in = d_model * 2 if use_batch_labels else d_model

    key = jax.random.PRNGKey(0)
    keys = jax.random.split(key, 13)
    kx, pkeys = keys[0], keys[1:]

    def linear(kw, kb, fan_in, fan_out):
        # Matches nn.Linear default init: U(-1/sqrt(fan_in), 1/sqrt(fan_in)).
        bound = 1.0 / math.sqrt(fan_in)
        w = jax.random.uniform(kw, (fan_out, fan_in), jnp.float32, -bound, bound)
        b = jax.random.uniform(kb, (fan_out,), jnp.float32, -bound, bound)
        return w, b

    def make_head(ks):
        w1, b1 = linear(ks[0], ks[1], d_in, d_model)
        w2, b2 = linear(ks[2], ks[3], d_model, d_model)
        w3, b3 = linear(ks[4], ks[5], d_model, peak_length)
        return (w1, b1, w2, b2, w3, b3)

    fc_params = make_head(pkeys[0:6])
    zero_params = make_head(pkeys[6:12]) if explicit_zero_prob else None

    x = jax.random.normal(kx, (batch, seq, d_in), jnp.float32)

    # Pack once (hoisted out of the hot path), then apply.
    packed = pack_expr_decoder_params(fc_params, zero_params)
    out = expr_decoder_apply(packed, x)
    for v in out.values():
        jax.block_until_ready(v)

    # Pure-JAX reference of ExprDecoder.forward.
    def ref_head(params, xx, slope=0.01):
        w1, b1, w2, b2, w3, b3 = params
        h = xx @ w1.T + b1
        h = jnp.where(h >= 0, h, slope * h)
        h = h @ w2.T + b2
        h = jnp.where(h >= 0, h, slope * h)
        return h @ w3.T + b3

    ref_pred = ref_head(fc_params, x)
    assert out["pred"].shape == (batch, seq, peak_length)
    assert jnp.allclose(out["pred"], ref_pred, atol=1e-4, rtol=1e-4)
    if explicit_zero_prob:
        ref_zero = jax.nn.sigmoid(ref_head(zero_params, x))
        assert out["zero_probs"].shape == (batch, seq, peak_length)
        assert jnp.allclose(out["zero_probs"], ref_zero, atol=1e-4, rtol=1e-4)

    print("KERNEL_OK")
</pallas_src>

<mosaic_0001>
module attributes {stable_mosaic.version = 11 : i64} {
  func.func @_expr_decoder_kernel(%arg0: i32, %arg1: memref<16x32xf32, #tpu.memory_space<vmem>>, %arg2: memref<32x64xf32, #tpu.memory_space<vmem>>, %arg3: memref<1x64xf32, #tpu.memory_space<vmem>>, %arg4: memref<64x64xf32, #tpu.memory_space<vmem>>, %arg5: memref<1x64xf32, #tpu.memory_space<vmem>>, %arg6: memref<64x128xf32, #tpu.memory_space<vmem>>, %arg7: memref<1x128xf32, #tpu.memory_space<vmem>>, %arg8: memref<16x128xf32, #tpu.memory_space<vmem>>) attributes {dimension_semantics = [#tpu.dimension_semantics<parallel>], iteration_bounds = array<i64: 1>, scalar_prefetch = 0 : i64, scratch_operands = 0 : i64, tpu.core_type = #tpu.core_type<tc>, window_params = [{transform_indices = @transform_0, window_bounds = array<i64: 16, 32>}, {pipeline_mode = #tpu.pipeline_mode<synchronous>, transform_indices = @transform_1, window_bounds = array<i64: 32, 64>}, {pipeline_mode = #tpu.pipeline_mode<synchronous>, transform_indices = @transform_2, window_bounds = array<i64: 1, 64>}, {pipeline_mode = #tpu.pipeline_mode<synchronous>, transform_indices = @transform_3, window_bounds = array<i64: 64, 64>}, {pipeline_mode = #tpu.pipeline_mode<synchronous>, transform_indices = @transform_4, window_bounds = array<i64: 1, 64>}, {pipeline_mode = #tpu.pipeline_mode<synchronous>, transform_indices = @transform_5, window_bounds = array<i64: 64, 128>}, {pipeline_mode = #tpu.pipeline_mode<synchronous>, transform_indices = @transform_6, window_bounds = array<i64: 1, 128>}, {transform_indices = @transform_7, window_bounds = array<i64: 16, 128>}]} {
    %c0 = arith.constant 0 : index
    %c0_0 = arith.constant 0 : index
    %0 = vector.load %arg1[%c0, %c0_0] : memref<16x32xf32, #tpu.memory_space<vmem>>, vector<16x32xf32>
    %c0_1 = arith.constant 0 : index
    %c0_2 = arith.constant 0 : index
    %1 = vector.load %arg2[%c0_1, %c0_2] : memref<32x64xf32, #tpu.memory_space<vmem>>, vector<32x64xf32>
    %cst = arith.constant dense<0.000000e+00> : vector<16x64xf32>
    %2 = tpu.matmul %0, %1, %cst {dimension_numbers = #tpu.dot_dimension_numbers<[1], [0], [0], [1], [0, 0, 1, 1], [], []>} : vector<16x32xf32>, vector<32x64xf32>, vector<16x64xf32> -> vector<16x64xf32>
    %c0_3 = arith.constant 0 : index
    %c0_4 = arith.constant 0 : index
    %3 = vector.load %arg3[%c0_3, %c0_4] : memref<1x64xf32, #tpu.memory_space<vmem>>, vector<1x64xf32>
    %4 = vector.broadcast %3 : vector<1x64xf32> to vector<16x64xf32>
    %5 = arith.addf %2, %4 : vector<16x64xf32>
    %cst_5 = arith.constant 0.000000e+00 : f32
    %6 = vector.broadcast %cst_5 : f32 to vector<16x64xf32>
    %7 = arith.cmpf oge, %5, %6 : vector<16x64xf32>
    %cst_6 = arith.constant 0.00999999977 : f32
    %8 = vector.broadcast %cst_6 : f32 to vector<16x64xf32>
    %9 = arith.mulf %8, %5 : vector<16x64xf32>
    %10 = arith.select %7, %5, %9 : vector<16x64xi1>, vector<16x64xf32>
    %c0_7 = arith.constant 0 : index
    %c0_8 = arith.constant 0 : index
    %11 = vector.load %arg4[%c0_7, %c0_8] : memref<64x64xf32, #tpu.memory_space<vmem>>, vector<64x64xf32>
    %cst_9 = arith.constant dense<0.000000e+00> : vector<16x64xf32>
    %12 = tpu.matmul %10, %11, %cst_9 {dimension_numbers = #tpu.dot_dimension_numbers<[1], [0], [0], [1], [0, 0, 1, 1], [], []>} : vector<16x64xf32>, vector<64x64xf32>, vector<16x64xf32> -> vector<16x64xf32>
    %c0_10 = arith.constant 0 : index
    %c0_11 = arith.constant 0 : index
    %13 = vector.load %arg5[%c0_10, %c0_11] : memref<1x64xf32, #tpu.memory_space<vmem>>, vector<1x64xf32>
    %14 = vector.broadcast %13 : vector<1x64xf32> to vector<16x64xf32>
    %15 = arith.addf %12, %14 : vector<16x64xf32>
    %cst_12 = arith.constant 0.000000e+00 : f32
    %16 = vector.broadcast %cst_12 : f32 to vector<16x64xf32>
    %17 = arith.cmpf oge, %15, %16 : vector<16x64xf32>
    %cst_13 = arith.constant 0.00999999977 : f32
    %18 = vector.broadcast %cst_13 : f32 to vector<16x64xf32>
    %19 = arith.mulf %18, %15 : vector<16x64xf32>
    %20 = arith.select %17, %15, %19 : vector<16x64xi1>, vector<16x64xf32>
    %c0_14 = arith.constant 0 : index
    %c0_15 = arith.constant 0 : index
    %21 = vector.load %arg6[%c0_14, %c0_15] : memref<64x128xf32, #tpu.memory_space<vmem>>, vector<64x128xf32>
    %cst_16 = arith.constant dense<0.000000e+00> : vector<16x128xf32>
    %22 = tpu.matmul %20, %21, %cst_16 {dimension_numbers = #tpu.dot_dimension_numbers<[1], [0], [0], [1], [0, 0, 1, 1], [], []>} : vector<16x64xf32>, vector<64x128xf32>, vector<16x128xf32> -> vector<16x128xf32>
    %c0_17 = arith.constant 0 : index
    %c0_18 = arith.constant 0 : index
    %23 = vector.load %arg7[%c0_17, %c0_18] : memref<1x128xf32, #tpu.memory_space<vmem>>, vector<1x128xf32>
    %24 = vector.broadcast %23 : vector<1x128xf32> to vector<16x128xf32>
    %25 = arith.addf %22, %24 : vector<16x128xf32>
    %c0_19 = arith.constant 0 : index
    %c0_20 = arith.constant 0 : index
    %26 = vector.load %arg8[%c0_19, %c0_20] : memref<16x128xf32, #tpu.memory_space<vmem>>, vector<16x128xf32>
    tpu.vector_store %arg8[%c0_19, %c0_20], %25 {strides = array<i32>} : memref<16x128xf32, #tpu.memory_space<vmem>>, vector<16x128xf32>,
    return
  }
  func.func @transform_0(%arg0: i32) -> (i32, i32) {
    %c0_i32 = arith.constant 0 : i32
    %c0_i32_0 = arith.constant 0 : i32
    return %arg0, %c0_i32 : i32, i32
  }
  func.func @transform_1(%arg0: i32) -> (i32, i32) {
    %c0_i32 = arith.constant 0 : i32
    %c0_i32_0 = arith.constant 0 : i32
    %c0_i32_1 = arith.constant 0 : i32
    return %c0_i32, %c0_i32_0 : i32, i32
  }
  func.func @transform_2(%arg0: i32) -> (i32, i32) {
    %c0_i32 = arith.constant 0 : i32
    %c0_i32_0 = arith.constant 0 : i32
    %c0_i32_1 = arith.constant 0 : i32
    return %c0_i32, %c0_i32_0 : i32, i32
  }
  func.func @transform_3(%arg0: i32) -> (i32, i32) {
    %c0_i32 = arith.constant 0 : i32
    %c0_i32_0 = arith.constant 0 : i32
    %c0_i32_1 = arith.constant 0 : i32
    return %c0_i32, %c0_i32_0 : i32, i32
  }
  func.func @transform_4(%arg0: i32) -> (i32, i32) {
    %c0_i32 = arith.constant 0 : i32
    %c0_i32_0 = arith.constant 0 : i32
    %c0_i32_1 = arith.constant 0 : i32
    return %c0_i32, %c0_i32_0 : i32, i32
  }
  func.func @transform_5(%arg0: i32) -> (i32, i32) {
    %c0_i32 = arith.constant 0 : i32
    %c0_i32_0 = arith.constant 0 : i32
    %c0_i32_1 = arith.constant 0 : i32
    return %c0_i32, %c0_i32_0 : i32, i32
  }
  func.func @transform_6(%arg0: i32) -> (i32, i32) {
    %c0_i32 = arith.constant 0 : i32
    %c0_i32_0 = arith.constant 0 : i32
    %c0_i32_1 = arith.constant 0 : i32
    return %c0_i32, %c0_i32_0 : i32, i32
  }
  func.func @transform_7(%arg0: i32) -> (i32, i32) {
    %c0_i32 = arith.constant 0 : i32
    %c0_i32_0 = arith.constant 0 : i32
    return %arg0, %c0_i32 : i32, i32
  }
}

</mosaic_0001>

<llo_original>
// kernel: tpu_custom_call.1
$region0: #{tpu_custom_call.1}
  #allocation0 [shape = 'u32[]', space=smem, size = 0x4, offset = 0x4, fixed_abs, tag = 'smem constant byte address 0x4 - core index']
  #allocation1 [shape = 'u32[144,128]{1,0:T(1,128)}', space=vmem, size = 0x12000, scoped, tag = 'internal scratch']
  %s0 = inlined_call_operand.hbm [shape: f32[16,32], index: 0, kind: input, shape index: {}]
  %s1 = inlined_call_operand.hbm [shape: f32[32,64], index: 1, kind: input, shape index: {}]
  %s2 = inlined_call_operand.vmem [shape: f32[1,64], index: 2, kind: input, shape index: {}]
  %s3 = inlined_call_operand.hbm [shape: f32[64,64], index: 3, kind: input, shape index: {}]
  %s4 = inlined_call_operand.vmem [shape: f32[1,64], index: 4, kind: input, shape index: {}]
  %s5 = inlined_call_operand.hbm [shape: f32[64,128], index: 5, kind: input, shape index: {}]
  %s6 = inlined_call_operand.vmem [shape: f32[1,128], index: 6, kind: input, shape index: {}]
  %s7 = inlined_call_operand.hbm [shape: f32[16,128], index: 7, kind: output, shape index: {}]
  %s8 = sld [smem:[#allocation0]]
  $region54: #{tpu_custom_call.1} parent=0
    _
  %s10 = ssub.s32 1, %s8
  %s11 = scalar_select 0, %s10, %s8
  $region1: #{tpu_custom_call.1} parent=0
    #allocation2 [shape = 'u8[8192]{0}', space=vmem, size = 0x2000, scoped, tag = 'input window, operand 0, single buffered']
    #allocation3 [shape = 's32[1]{0}', space=sflag, size = 0x4, scoped, tag = 'scoped memory for tpu_custom_call.1']
    #allocation4 [shape = 's32[1]{0}', space=sflag, size = 0x4, scoped, tag = 'scoped memory for tpu_custom_call.1']
    #allocation5 [shape = 'u8[16384]{0}', space=vmem, size = 0x4000, scoped, tag = 'input window, operand 1, single buffered']
    #allocation6 [shape = 's32[1]{0}', space=sflag, size = 0x4, scoped, tag = 'scoped memory for tpu_custom_call.1']
    #allocation7 [shape = 'u8[32768]{0}', space=vmem, size = 0x8000, scoped, tag = 'input window, operand 3, single buffered']
    #allocation8 [shape = 'u8[32768]{0}', space=vmem, size = 0x8000, scoped, tag = 'input window, operand 5, single buffered']
    #allocation9 [shape = 's32[1]{0}', space=sflag, size = 0x4, scoped, tag = 'scoped memory for tpu_custom_call.1']
    #allocation10 [shape = 'u8[8192]{0}', space=vmem, size = 0x2000, scoped, tag = 'output window, operand 0, single buffered']
    %12 = vsyncpa [#allocation3], 0
    %13 = vsyncpa [#allocation6], 0
    %14 = vsyncpa [#allocation9], 0
    %15 = vsyncpa [#allocation4], 0
    // Predicated region
    $region2: #{tpu_custom_call.1} parent=1 // pred_check
      _
    $region3: #{tpu_custom_call.1} parent=1 // pred_check_branch
      %17 = sbr.rel (0) target = $region5
    $region4: #{tpu_custom_call.1} parent=1 // pred_region
      %s19 = ssub.s32 256, 256
      %20 = vsyncadd [#allocation3], %s19
      %s21 = sshll.u32 [#allocation2], 4
      %s22 = int_to_ptr.vmem [resolvable:$true] %s21
      %27 = dma.hbm_to_vmem [thread:$0]  %s0, 256, %s22, [#allocation3], 128, 128, 8
    $region5: #{tpu_custom_call.1} parent=1 // pred_fallthru
      _
    // Predicated region
    $region6: #{tpu_custom_call.1} parent=1 // pred_check
      _
    $region7: #{tpu_custom_call.1} parent=1 // pred_check_branch
      %29 = sbr.rel (0) target = $region9
    $region8: #{tpu_custom_call.1} parent=1 // pred_region
      %s31 = ssub.s32 512, 512
      %32 = vsyncadd [#allocation6], %s31
      %s33 = sshll.u32 [#allocation5], 4
      %s34 = int_to_ptr.vmem [resolvable:$true] %s33
      %39 = dma.hbm_to_vmem [thread:$0]  %s1, 512, %s34, [#allocation6], 128, 128, 8
    $region9: #{tpu_custom_call.1} parent=1 // pred_fallthru
      _
    // Predicated region
    $region10: #{tpu_custom_call.1} parent=1 // pred_check
      _
    $region11: #{tpu_custom_call.1} parent=1 // pred_check_branch
      %41 = sbr.rel (0) target = $region13
    $region12: #{tpu_custom_call.1} parent=1 // pred_region
      _
    $region13: #{tpu_custom_call.1} parent=1 // pred_fallthru
      _
    // Predicated region
    $region14: #{tpu_custom_call.1} parent=1 // pred_check
      _
    $region15: #{tpu_custom_call.1} parent=1 // pred_check_branch
      %43 = sbr.rel (0) target = $region17
    $region16: #{tpu_custom_call.1} parent=1 // pred_region
      %s45 = ssub.s32 1024, 1024
      %46 = vsyncadd [#allocation6], %s45
      %s47 = sshll.u32 [#allocation7], 4
      %s48 = int_to_ptr.vmem [resolvable:$true] %s47
      %53 = dma.hbm_to_vmem [thread:$0]  %s3, 1024, %s48, [#allocation6], 128, 128, 8
    $region17: #{tpu_custom_call.1} parent=1 // pred_fallthru
      _
    // Predicated region
    $region18: #{tpu_custom_call.1} parent=1 // pred_check
      _
    $region19: #{tpu_custom_call.1} parent=1 // pred_check_branch
      %55 = sbr.rel (0) target = $region21
    $region20: #{tpu_custom_call.1} parent=1 // pred_region
      _
    $region21: #{tpu_custom_call.1} parent=1 // pred_fallthru
      _
    // Predicated region
    $region22: #{tpu_custom_call.1} parent=1 // pred_check
      _
    $region23: #{tpu_custom_call.1} parent=1 // pred_check_branch
      %57 = sbr.rel (0) target = $region25
    $region24: #{tpu_custom_call.1} parent=1 // pred_region
      %s59 = ssub.s32 1024, 1024
      %60 = vsyncadd [#allocation9], %s59
      %s61 = sshll.u32 [#allocation8], 4
      %s62 = int_to_ptr.vmem [resolvable:$true] %s61
      %67 = dma.hbm_to_vmem [thread:$0]  %s5, 1024, %s62, [#allocation9], 128, 128, 8
    $region25: #{tpu_custom_call.1} parent=1 // pred_fallthru
      _
    // Predicated region
    $region26: #{tpu_custom_call.1} parent=1 // pred_check
      _
    $region27: #{tpu_custom_call.1} parent=1 // pred_check_branch
      %69 = sbr.rel (0) target = $region29
    $region28: #{tpu_custom_call.1} parent=1 // pred_region
      _
    $region29: #{tpu_custom_call.1} parent=1 // pred_fallthru
      _
    // Predicated region
    $region30: #{tpu_custom_call.1} parent=1 // pred_check
      _
    $region31: #{tpu_custom_call.1} parent=1 // pred_check_branch
      %71 = sbr.rel (0) target = $region33
    $region32: #{tpu_custom_call.1} parent=1 // pred_region
      %72 = dma.done [#allocation3], 256
    $region33: #{tpu_custom_call.1} parent=1 // pred_fallthru
      _
    // Predicated region
    $region34: #{tpu_custom_call.1} parent=1 // pred_check
      _
    $region35: #{tpu_custom_call.1} parent=1 // pred_check_branch
      %74 = sbr.rel (0) target = $region37
    $region36: #{tpu_custom_call.1} parent=1 // pred_region
      %75 = dma.done [#allocation6], 512
    $region37: #{tpu_custom_call.1} parent=1 // pred_fallthru
      _
    // Predicated region
    $region38: #{tpu_custom_call.1} parent=1 // pred_check
      _
    $region39: #{tpu_custom_call.1} parent=1 // pred_check_branch
      %77 = sbr.rel (0) target = $region41
    $region40: #{tpu_custom_call.1} parent=1 // pred_region
      %78 = dma.done [#allocation6], 1024
    $region41: #{tpu_custom_call.1} parent=1 // pred_fallthru
      _
    // Predicated region
    $region42: #{tpu_custom_call.1} parent=1 // pred_check
      _
    $region43: #{tpu_custom_call.1} parent=1 // pred_check_branch
      %80 = sbr.rel (0) target = $region45
    $region44: #{tpu_custom_call.1} parent=1 // pred_region
      %81 = dma.done [#allocation9], 1024
    $region45: #{tpu_custom_call.1} parent=1 // pred_fallthru
      _
    %v82 = vld [vmem:[#allocation2] sm:$0xff]
    %v83 = vld [vmem:[#allocation2 + $0x8] sm:$0xff]
    %v84 = vld [vmem:[#allocation5] sm:$0xff]
    %v85 = vld [vmem:[#allocation5 + $0x8] sm:$0xff]
    %v86 = vld [vmem:[#allocation5 + $0x10] sm:$0xff]
    %v87 = vld [vmem:[#allocation5 + $0x18] sm:$0xff]
    %v88 = vld [vmem:[%s2] sm:$0x1]
    %v90 = vlaneseq
    %v91 = vshrl.u32 %v90, 7
    %v92 = vsub.s32 0, %v91
    %v93 = vrot.slane %v88, %v92
    %vm95 = vcmask 261120
    %v97 = vsel %vm95, %v82, 0
    %v100 = vsel %vm95, %v83, 0
    %102 = vmatprep.subr.mxu0 0.0
    %103 = vmatpush1.msra.mxu0 %v84
    %104 = vmatprep.subr.mxu0 0.0
    %105 = vmatpush1.msra.mxu0 %v85
    %106 = vmatprep.subr.mxu0 0.0
    %107 = vmatpush1.msra.mxu0 %v86
    %108 = vmatprep.subr.mxu0 0.0
    %109 = vmatpush1.msra.mxu0 %v87
    %110 = vmatprep.subr.mxu0 0.0
    %111 = vmatpush1.msra.mxu0 0.0
    %112 = vmatprep.subr.mxu0 0.0
    %113 = vmatpush1.msra.mxu0 0.0
    %114 = vmatprep.subr.mxu0 0.0
    %115 = vmatpush1.msra.mxu0 0.0
    %116 = vmatprep.subr.mxu0 0.0
    %117 = vmatpush1.msra.mxu0 0.0
    %118 = vmatprep.subr.mxu0 0.0
    %119 = vmatpush1.msra.mxu0 0.0
    %120 = vmatprep.subr.mxu0 0.0
    %121 = vmatpush1.msra.mxu0 0.0
    %122 = vmatprep.subr.mxu0 0.0
    %123 = vmatpush1.msra.mxu0 0.0
    %124 = vmatprep.subr.mxu0 0.0
    %125 = vmatpush1.msra.mxu0 0.0
    %126 = vmatprep.subr.mxu0 0.0
    %127 = vmatpush1.msra.mxu0 0.0
    %128 = vmatprep.subr.mxu0 0.0
    %129 = vmatpush1.msra.mxu0 0.0
    %130 = vmatprep.subr.mxu0 0.0
    %131 = vmatpush1.msra.mxu0 0.0
    %132 = vmatprep.subr.mxu0 0.0
    %133 = vmatpush1.msra.mxu0 0.0
    %134 = vmatprep.subr.mxu0 0.0
    %135 = vmatpush1.msra.mxu0 0.0
    %136 = vmatprep.subr.mxu0 0.0
    %137 = vmatpush1.msra.mxu0 0.0
    %138 = vmatprep.subr.mxu0 0.0
    %139 = vmatpush1.msra.mxu0 0.0
    %140 = vmatprep.subr.mxu0 0.0
    %141 = vmatpush1.msra.mxu0 0.0
    %142 = vmatprep.subr.mxu0 0.0
    %143 = vmatpush1.msra.mxu0 0.0
    %144 = vmatprep.subr.mxu0 0.0
    %145 = vmatpush1.msra.mxu0 0.0
    %146 = vmatprep.subr.mxu0 0.0
    %147 = vmatpush1.msra.mxu0 0.0
    %148 = vmatprep.subr.mxu0 0.0
    %149 = vmatpush1.msra.mxu0 0.0
    %150 = vmatprep.subr.mxu0 0.0
    %151 = vmatpush1.msra.mxu0 0.0
    %152 = vmatprep.subr.mxu0 0.0
    %153 = vmatpush1.msra.mxu0 0.0
    %154 = vmatprep.subr.mxu0 0.0
    %155 = vmatpush1.msra.mxu0 0.0
    %156 = vmatprep.subr.mxu0 0.0
    %157 = vmatpush1.msra.mxu0 0.0
    %158 = vmatprep.subr.mxu0 0.0
    %159 = vmatpush1.msra.mxu0 0.0
    %160 = vmatprep.subr.mxu0 0.0
    %161 = vmatpush1.msra.mxu0 0.0
    %162 = vmatprep.subr.mxu0 0.0
    %163 = vmatpush1.msra.mxu0 0.0
    %164 = vmatprep.subr.mxu0 0.0
    %165 = vmatpush1.msra.mxu0 0.0
    %166 = vmatprep.mubr.f32.mxu0 0.0
    %167 = vmatmul.mubr.f32.gmra.mrb[0].mxu0 %v97
    %v168 = vpop.f32.mrb[0].mxu0
    %v169 = vadd.f32 %v93, %v168
    %v170 = vpop.f32.mrb[0].mxu0
    %171 = vmatprep.mubr.f32.mxu0 0.0
    %172 = vmatmul.mubr.f32.gmra.mrb[0].mxu0 %v100
    %v173 = vpop.f32.mrb[0].mxu0
    %v174 = vadd.f32 %v93, %v173
    %v175 = vpop.f32.mrb[0].mxu0
    %176 = vdwg.mxu0
    %vm177 = vcmp.ge.f32.partialorder %v169, 0.0
    %vm178 = vcmp.ge.f32.partialorder %v174, 0.0
    %v179 = vmul.f32 %v169, 0.01
    %v180 = vmul.f32 %v174, 0.01
    %v181 = vsel %vm177, %v169, %v179
    %v182 = vsel %vm178, %v174, %v180
    %v183 = vld [vmem:[#allocation7] sm:$0xff]
    %v184 = vld [vmem:[#allocation7 + $0x8] sm:$0xff]
    %v185 = vld [vmem:[#allocation7 + $0x10] sm:$0xff]
    %v186 = vld [vmem:[#allocation7 + $0x18] sm:$0xff]
    %v187 = vld [vmem:[#allocation7 + $0x20] sm:$0xff]
    %v188 = vld [vmem:[#allocation7 + $0x28] sm:$0xff]
    %v189 = vld [vmem:[#allocation7 + $0x30] sm:$0xff]
    %v190 = vld [vmem:[#allocation7 + $0x38] sm:$0xff]
    %v191 = vld [vmem:[%s4] sm:$0x1]
    %v193 = vlaneseq
    %v194 = vshrl.u32 %v193, 7
    %v195 = vsub.s32 0, %v194
    %v196 = vrot.slane %v191, %v195
    %vm198 = vcmask 523264
    %v200 = vsel %vm198, %v181, 0
    %v203 = vsel %vm198, %v182, 0
    %205 = vmatprep.subr.mxu0 0.0
    %206 = vmatpush1.msra.mxu0 %v183
    %207 = vmatprep.subr.mxu0 0.0
    %208 = vmatpush1.msra.mxu0 %v184
    %209 = vmatprep.subr.mxu0 0.0
    %210 = vmatpush1.msra.mxu0 %v185
    %211 = vmatprep.subr.mxu0 0.0
    %212 = vmatpush1.msra.mxu0 %v186
    %213 = vmatprep.subr.mxu0 0.0
    %214 = vmatpush1.msra.mxu0 %v187
    %215 = vmatprep.subr.mxu0 0.0
    %216 = vmatpush1.msra.mxu0 %v188
    %217 = vmatprep.subr.mxu0 0.0
    %218 = vmatpush1.msra.mxu0 %v189
    %219 = vmatprep.subr.mxu0 0.0
    %220 = vmatpush1.msra.mxu0 %v190
    %221 = vmatprep.subr.mxu0 0.0
    %222 = vmatpush1.msra.mxu0 0.0
    %223 = vmatprep.subr.mxu0 0.0
    %224 = vmatpush1.msra.mxu0 0.0
    %225 = vmatprep.subr.mxu0 0.0
    %226 = vmatpush1.msra.mxu0 0.0
    %227 = vmatprep.subr.mxu0 0.0
    %228 = vmatpush1.msra.mxu0 0.0
    %229 = vmatprep.subr.mxu0 0.0
    %230 = vmatpush1.msra.mxu0 0.0
    %231 = vmatprep.subr.mxu0 0.0
    %232 = vmatpush1.msra.mxu0 0.0
    %233 = vmatprep.subr.mxu0 0.0
    %234 = vmatpush1.msra.mxu0 0.0
    %235 = vmatprep.subr.mxu0 0.0
    %236 = vmatpush1.msra.mxu0 0.0
    %237 = vmatprep.subr.mxu0 0.0
    %238 = vmatpush1.msra.mxu0 0.0
    %239 = vmatprep.subr.mxu0 0.0
    %240 = vmatpush1.msra.mxu0 0.0
    %241 = vmatprep.subr.mxu0 0.0
    %242 = vmatpush1.msra.mxu0 0.0
    %243 = vmatprep.subr.mxu0 0.0
    %244 = vmatpush1.msra.mxu0 0.0
    %245 = vmatprep.subr.mxu0 0.0
    %246 = vmatpush1.msra.mxu0 0.0
    %247 = vmatprep.subr.mxu0 0.0
    %248 = vmatpush1.msra.mxu0 0.0
    %249 = vmatprep.subr.mxu0 0.0
    %250 = vmatpush1.msra.mxu0 0.0
    %251 = vmatprep.subr.mxu0 0.0
    %252 = vmatpush1.msra.mxu0 0.0
    %253 = vmatprep.subr.mxu0 0.0
    %254 = vmatpush1.msra.mxu0 0.0
    %255 = vmatprep.subr.mxu0 0.0
    %256 = vmatpush1.msra.mxu0 0.0
    %257 = vmatprep.subr.mxu0 0.0
    %258 = vmatpush1.msra.mxu0 0.0
    %259 = vmatprep.subr.mxu0 0.0
    %260 = vmatpush1.msra.mxu0 0.0
    %261 = vmatprep.subr.mxu0 0.0
    %262 = vmatpush1.msra.mxu0 0.0
    %263 = vmatprep.subr.mxu0 0.0
    %264 = vmatpush1.msra.mxu0 0.0
    %265 = vmatprep.subr.mxu0 0.0
    %266 = vmatpush1.msra.mxu0 0.0
    %267 = vmatprep.subr.mxu0 0.0
    %268 = vmatpush1.msra.mxu0 0.0
    %269 = vmatprep.mubr.f32.mxu0 0.0
    %270 = vmatmul.mubr.f32.gmra.mrb[0].mxu0 %v200
    %v271 = vpop.f32.mrb[0].mxu0
    %v272 = vadd.f32 %v196, %v271
    %v273 = vpop.f32.mrb[0].mxu0
    %274 = vmatprep.mubr.f32.mxu0 0.0
    %275 = vmatmul.mubr.f32.gmra.mrb[0].mxu0 %v203
    %v276 = vpop.f32.mrb[0].mxu0
    %v277 = vadd.f32 %v196, %v276
    %v278 = vpop.f32.mrb[0].mxu0
    %279 = vdwg.mxu0
    %vm280 = vcmp.ge.f32.partialorder %v272, 0.0
    %vm281 = vcmp.ge.f32.partialorder %v277, 0.0
    %v282 = vmul.f32 %v272, 0.01
    %v283 = vmul.f32 %v277, 0.01
    %v284 = vsel %vm280, %v272, %v282
    %v285 = vsel %vm281, %v277, %v283
    %v286 = vld [vmem:[#allocation8] sm:$0xff]
    %v287 = vld [vmem:[#allocation8 + $0x8] sm:$0xff]
    %v288 = vld [vmem:[#allocation8 + $0x10] sm:$0xff]
    %v289 = vld [vmem:[#allocation8 + $0x18] sm:$0xff]
    %v290 = vld [vmem:[#allocation8 + $0x20] sm:$0xff]
    %v291 = vld [vmem:[#allocation8 + $0x28] sm:$0xff]
    %v292 = vld [vmem:[#allocation8 + $0x30] sm:$0xff]
    %v293 = vld [vmem:[#allocation8 + $0x38] sm:$0xff]
    %v294 = vld [vmem:[%s6] sm:$0x1]
    %v296 = vlaneseq
    %v297 = vshrl.u32 %v296, 7
    %v298 = vsub.s32 0, %v297
    %v299 = vrot.slane %v294, %v298
    %v302 = vsel %vm198, %v284, 0
    %v305 = vsel %vm198, %v285, 0
    %307 = vmatprep.subr.mxu0 0.0
    %308 = vmatpush1.msra.mxu0 %v286
    %309 = vmatprep.subr.mxu0 0.0
    %310 = vmatpush1.msra.mxu0 %v287
    %311 = vmatprep.subr.mxu0 0.0
    %312 = vmatpush1.msra.mxu0 %v288
    %313 = vmatprep.subr.mxu0 0.0
    %314 = vmatpush1.msra.mxu0 %v289
    %315 = vmatprep.subr.mxu0 0.0
    %316 = vmatpush1.msra.mxu0 %v290
    %317 = vmatprep.subr.mxu0 0.0
    %318 = vmatpush1.msra.mxu0 %v291
    %319 = vmatprep.subr.mxu0 0.0
    %320 = vmatpush1.msra.mxu0 %v292
    %321 = vmatprep.subr.mxu0 0.0
    %322 = vmatpush1.msra.mxu0 %v293
    %323 = vmatprep.subr.mxu0 0.0
    %324 = vmatpush1.msra.mxu0 0.0
    %325 = vmatprep.subr.mxu0 0.0
    %326 = vmatpush1.msra.mxu0 0.0
    %327 = vmatprep.subr.mxu0 0.0
    %328 = vmatpush1.msra.mxu0 0.0
    %329 = vmatprep.subr.mxu0 0.0
    %330 = vmatpush1.msra.mxu0 0.0
    %331 = vmatprep.subr.mxu0 0.0
    %332 = vmatpush1.msra.mxu0 0.0
    %333 = vmatprep.subr.mxu0 0.0
    %334 = vmatpush1.msra.mxu0 0.0
    %335 = vmatprep.subr.mxu0 0.0
    %336 = vmatpush1.msra.mxu0 0.0
    %337 = vmatprep.subr.mxu0 0.0
    %338 = vmatpush1.msra.mxu0 0.0
    %339 = vmatprep.subr.mxu0 0.0
    %340 = vmatpush1.msra.mxu0 0.0
    %341 = vmatprep.subr.mxu0 0.0
    %342 = vmatpush1.msra.mxu0 0.0
    %343 = vmatprep.subr.mxu0 0.0
    %344 = vmatpush1.msra.mxu0 0.0
    %345 = vmatprep.subr.mxu0 0.0
    %346 = vmatpush1.msra.mxu0 0.0
    %347 = vmatprep.subr.mxu0 0.0
    %348 = vmatpush1.msra.mxu0 0.0
    %349 = vmatprep.subr.mxu0 0.0
    %350 = vmatpush1.msra.mxu0 0.0
    %351 = vmatprep.subr.mxu0 0.0
    %352 = vmatpush1.msra.mxu0 0.0
    %353 = vmatprep.subr.mxu0 0.0
    %354 = vmatpush1.msra.mxu0 0.0
    %355 = vmatprep.subr.mxu0 0.0
    %356 = vmatpush1.msra.mxu0 0.0
    %357 = vmatprep.subr.mxu0 0.0
    %358 = vmatpush1.msra.mxu0 0.0
    %359 = vmatprep.subr.mxu0 0.0
    %360 = vmatpush1.msra.mxu0 0.0
    %361 = vmatprep.subr.mxu0 0.0
    %362 = vmatpush1.msra.mxu0 0.0
    %363 = vmatprep.subr.mxu0 0.0
    %364 = vmatpush1.msra.mxu0 0.0
    %365 = vmatprep.subr.mxu0 0.0
    %366 = vmatpush1.msra.mxu0 0.0
    %367 = vmatprep.subr.mxu0 0.0
    %368 = vmatpush1.msra.mxu0 0.0
    %369 = vmatprep.subr.mxu0 0.0
    %370 = vmatpush1.msra.mxu0 0.0
    %371 = vmatprep.mubr.f32.mxu0 0.0
    %372 = vmatmul.mubr.f32.gmra.mrb[0].mxu0 %v302
    %v373 = vpop.f32.mrb[0].mxu0
    %v374 = vadd.f32 %v299, %v373
    %v375 = vpop.f32.mrb[0].mxu0
    %376 = vmatprep.mubr.f32.mxu0 0.0
    %377 = vmatmul.mubr.f32.gmra.mrb[0].mxu0 %v305
    %v378 = vpop.f32.mrb[0].mxu0
    %v379 = vadd.f32 %v299, %v378
    %v380 = vpop.f32.mrb[0].mxu0
    %381 = vdwg.mxu0
    %382 = vst [vmem:[#allocation10] sm:$0xff] %v374
    %383 = vst [vmem:[#allocation10 + $0x8] sm:$0xff] %v379
    // Predicated region
    $region46: #{tpu_custom_call.1} parent=1 // pred_check
      _
    $region47: #{tpu_custom_call.1} parent=1 // pred_check_branch
      %385 = sbr.rel (0) target = $region49
    $region48: #{tpu_custom_call.1} parent=1 // pred_region
      %s387 = ssub.s32 256, 256
      %388 = vsyncadd [#allocation4], %s387
      %s389 = sshll.u32 [#allocation10], 4
      %s390 = int_to_ptr.vmem [resolvable:$true] %s389
      %395 = dma.vmem_to_hbm [thread:$0]  %s390, 256, %s7, [#allocation4], 128, 128, 8
    $region49: #{tpu_custom_call.1} parent=1 // pred_fallthru
      _
    // Predicated region
    $region50: #{tpu_custom_call.1} parent=1 // pred_check
      _
    $region51: #{tpu_custom_call.1} parent=1 // pred_check_branch
      %397 = sbr.rel (0) target = $region53
    $region52: #{tpu_custom_call.1} parent=1 // pred_region
      %398 = dma.done [#allocation4], 256
    $region53: #{tpu_custom_call.1} parent=1 // pred_fallthru
      _
    %399 = vsyncpa [#allocation3], 1
    %400 = vsyncpa [#allocation6], 1
    %401 = vsyncpa [#allocation9], 1
    %402 = vsyncpa [#allocation4], 1

</llo_original>
